<compile_context>
chip_gen: v6e
topology: v6e:2x2x1
jax: 0.10.0
libtpu: 0.0.40
codegen_flags: <defaults>
</compile_context>

<pallas_src>
import functools
import math

import jax
import jax.numpy as jnp
from jax.experimental import pallas as pl
from jax.experimental.pallas import tpu as pltpu


def _round_up(x, m):
    return (x + m - 1) // m * m


def _proj_kernel(x_ref, w_ref, b_ref, o_ref, acc_ref):
    # x_ref: (tm, tk), w_ref: (tk, tn), b_ref: (1, tn), o_ref: (tm, tn)
    k = pl.program_id(2)

    @pl.when(k == 0)
    def _():
        acc_ref[...] = jnp.zeros_like(acc_ref)

    acc_ref[...] += jnp.dot(
        x_ref[...], w_ref[...], preferred_element_type=jnp.float32
    )

    @pl.when(k == pl.num_programs(2) - 1)
    def _():
        o_ref[...] = (
            acc_ref[...] + b_ref[...].astype(jnp.float32)
        ).astype(o_ref.dtype)


@functools.partial(jax.jit, static_argnames=("tm", "tn", "tk"))
def _projection_2d(x2, w_t, bias, tm, tn, tk):
    m, d = x2.shape
    v = w_t.shape[1]

    mp = _round_up(m, tm)
    dp = _round_up(d, tk)
    vp = _round_up(v, tn)

    xp = jnp.pad(x2, ((0, mp - m), (0, dp - d))) if (mp != m or dp != d) else x2
    wp = jnp.pad(w_t, ((0, dp - d), (0, vp - v))) if (dp != d or vp != v) else w_t
    bp = jnp.pad(bias, (0, vp - v)) if vp != v else bias
    bp = bp.reshape(1, vp)

    grid = (mp // tm, vp // tn, dp // tk)
    itemsize = jnp.dtype(x2.dtype).itemsize

    out = pl.pallas_call(
        _proj_kernel,
        out_shape=jax.ShapeDtypeStruct((mp, vp), x2.dtype),
        grid_spec=pltpu.PrefetchScalarGridSpec(
            num_scalar_prefetch=0,
            grid=grid,
            in_specs=[
                pl.BlockSpec((tm, tk), lambda i, j, k: (i, k)),
                pl.BlockSpec((tk, tn), lambda i, j, k: (k, j)),
                pl.BlockSpec((1, tn), lambda i, j, k: (0, j)),
            ],
            out_specs=pl.BlockSpec((tm, tn), lambda i, j, k: (i, j)),
            scratch_shapes=[pltpu.VMEM((tm, tn), jnp.float32)],
        ),
        compiler_params=pltpu.CompilerParams(
            dimension_semantics=("parallel", "parallel", "arbitrary"),
            vmem_limit_bytes=64 << 20,
        ),
        cost_estimate=pl.CostEstimate(
            flops=2 * mp * dp * vp,
            transcendentals=0,
            bytes_accessed=(mp * dp + dp * vp + mp * vp + vp) * itemsize,
        ),
    )(xp, wp, bp)

    if mp != m or vp != v:
        out = out[:m, :v]
    return out


def projection_forward(x, weight, bias, *, tm=256, tn=512, tk=512):
    """Pallas equivalent of ProjectionLayer.forward.

    x: (..., d_model)
    weight: (vocab_size, d_model)  (PyTorch nn.Linear layout)
    bias: (vocab_size,)
    Returns: (..., vocab_size) = x @ weight.T + bias
    """
    *lead, d = x.shape
    m = 1
    for s in lead:
        m *= s
    v = weight.shape[0]

    # Clamp tiles for small problems while keeping (8, 128) alignment
    # (row tile multiple of 8; lane-side tiles multiples of 128).
    tm = min(tm, _round_up(m, 8))
    tn = min(tn, _round_up(v, 128))
    tk = min(tk, _round_up(d, 128))

    x2 = x.reshape(m, d)
    out2 = _projection_2d(x2, weight.T, bias, tm, tn, tk)
    return out2.reshape(*lead, v)


if __name__ == "__main__":
    key = jax.random.PRNGKey(0)
    batch, seq, d_model, vocab_size = 2, 8, 128, 256

    kx, kw, kb = jax.random.split(key, 3)
    x = jax.random.normal(kx, (batch, seq, d_model), dtype=jnp.float32)
    bound = 1.0 / math.sqrt(d_model)  # nn.Linear-style init range
    weight = jax.random.uniform(
        kw, (vocab_size, d_model), minval=-bound, maxval=bound, dtype=jnp.float32
    )
    bias = jax.random.uniform(
        kb, (vocab_size,), minval=-bound, maxval=bound, dtype=jnp.float32
    )

    out = projection_forward(x, weight, bias)
    out = jax.block_until_ready(out)

    ref = (x.reshape(-1, d_model) @ weight.T + bias).reshape(
        batch, seq, vocab_size
    )
    assert out.shape == (batch, seq, vocab_size)
    assert jnp.allclose(out, ref, atol=1e-4, rtol=1e-4), "mismatch vs reference"
    print("KERNEL_OK")
</pallas_src>

<mosaic_0001>
module attributes {stable_mosaic.version = 11 : i64} {
  func.func @_proj_kernel(%arg0: i32, %arg1: i32, %arg2: i32, %arg3: memref<16x128xf32, #tpu.memory_space<vmem>>, %arg4: memref<128x256xf32, #tpu.memory_space<vmem>>, %arg5: memref<1x256xf32, #tpu.memory_space<vmem>>, %arg6: memref<16x256xf32, #tpu.memory_space<vmem>>, %arg7: memref<16x256xf32, #tpu.memory_space<vmem>>) attributes {dimension_semantics = [#tpu.dimension_semantics<parallel>, #tpu.dimension_semantics<parallel>, #tpu.dimension_semantics<arbitrary>], iteration_bounds = array<i64: 1, 1, 1>, scalar_prefetch = 0 : i64, scratch_operands = 1 : i64, tpu.core_type = #tpu.core_type<tc>, window_params = [{transform_indices = @transform_0, window_bounds = array<i64: 16, 128>}, {transform_indices = @transform_1, window_bounds = array<i64: 128, 256>}, {transform_indices = @transform_2, window_bounds = array<i64: 1, 256>}, {transform_indices = @transform_3, window_bounds = array<i64: 16, 256>}]} {
    %c0_i32 = arith.constant 0 : i32
    %0 = arith.cmpi eq, %arg2, %c0_i32 : i32
    %1 = arith.extui %0 : i1 to i32
    %c0_i32_0 = arith.constant 0 : i32
    %2 = arith.cmpi ne, %1, %c0_i32_0 : i32
    scf.if %2 {
      %cst_10 = arith.constant 0.000000e+00 : f32
      %12 = vector.broadcast %cst_10 : f32 to vector<16x256xf32>
      %c0_11 = arith.constant 0 : index
      %c0_12 = arith.constant 0 : index
      %13 = vector.load %arg7[%c0_11, %c0_12] : memref<16x256xf32, #tpu.memory_space<vmem>>, vector<16x256xf32>
      tpu.vector_store %arg7[%c0_11, %c0_12], %12 {strides = array<i32>} : memref<16x256xf32, #tpu.memory_space<vmem>>, vector<16x256xf32>,
    } else {
    }
    %c0 = arith.constant 0 : index
    %c0_1 = arith.constant 0 : index
    %3 = vector.load %arg7[%c0, %c0_1] : memref<16x256xf32, #tpu.memory_space<vmem>>, vector<16x256xf32>
    %c0_2 = arith.constant 0 : index
    %c0_3 = arith.constant 0 : index
    %4 = vector.load %arg3[%c0_2, %c0_3] : memref<16x128xf32, #tpu.memory_space<vmem>>, vector<16x128xf32>
    %c0_4 = arith.constant 0 : index
    %c0_5 = arith.constant 0 : index
    %5 = vector.load %arg4[%c0_4, %c0_5] : memref<128x256xf32, #tpu.memory_space<vmem>>, vector<128x256xf32>
    %cst = arith.constant dense<0.000000e+00> : vector<16x256xf32>
    %6 = tpu.matmul %4, %5, %cst {dimension_numbers = #tpu.dot_dimension_numbers<[1], [0], [0], [1], [0, 0, 1, 1], [], []>} : vector<16x128xf32>, vector<128x256xf32>, vector<16x256xf32> -> vector<16x256xf32>
    %7 = arith.addf %3, %6 : vector<16x256xf32>
    %c0_6 = arith.constant 0 : index
    %c0_7 = arith.constant 0 : index
    %8 = vector.load %arg7[%c0_6, %c0_7] : memref<16x256xf32, #tpu.memory_space<vmem>>, vector<16x256xf32>
    tpu.vector_store %arg7[%c0_6, %c0_7], %7 {strides = array<i32>} : memref<16x256xf32, #tpu.memory_space<vmem>>, vector<16x256xf32>,
    %c0_i32_8 = arith.constant 0 : i32
    %9 = arith.cmpi eq, %arg2, %c0_i32_8 : i32
    %10 = arith.extui %9 : i1 to i32
    %c0_i32_9 = arith.constant 0 : i32
    %11 = arith.cmpi ne, %10, %c0_i32_9 : i32
    scf.if %11 {
      %c0_10 = arith.constant 0 : index
      %c0_11 = arith.constant 0 : index
      %12 = vector.load %arg7[%c0_10, %c0_11] : memref<16x256xf32, #tpu.memory_space<vmem>>, vector<16x256xf32>
      %c0_12 = arith.constant 0 : index
      %c0_13 = arith.constant 0 : index
      %13 = vector.load %arg5[%c0_12, %c0_13] : memref<1x256xf32, #tpu.memory_space<vmem>>, vector<1x256xf32>
      %14 = vector.broadcast %13 : vector<1x256xf32> to vector<16x256xf32>
      %15 = arith.addf %12, %14 : vector<16x256xf32>
      %c0_14 = arith.constant 0 : index
      %c0_15 = arith.constant 0 : index
      %16 = vector.load %arg6[%c0_14, %c0_15] : memref<16x256xf32, #tpu.memory_space<vmem>>, vector<16x256xf32>
      tpu.vector_store %arg6[%c0_14, %c0_15], %15 {strides = array<i32>} : memref<16x256xf32, #tpu.memory_space<vmem>>, vector<16x256xf32>,
    } else {
    }
    return
  }
  func.func @transform_0(%arg0: i32, %arg1: i32, %arg2: i32) -> (i32, i32) {
    %c0_i32 = arith.constant 0 : i32
    return %arg0, %arg2 : i32, i32
  }
  func.func @transform_1(%arg0: i32, %arg1: i32, %arg2: i32) -> (i32, i32) {
    %c0_i32 = arith.constant 0 : i32
    return %arg2, %arg1 : i32, i32
  }
  func.func @transform_2(%arg0: i32, %arg1: i32, %arg2: i32) -> (i32, i32) {
    %c0_i32 = arith.constant 0 : i32
    %c0_i32_0 = arith.constant 0 : i32
    return %c0_i32, %arg1 : i32, i32
  }
  func.func @transform_3(%arg0: i32, %arg1: i32, %arg2: i32) -> (i32, i32) {
    %c0_i32 = arith.constant 0 : i32
    return %arg0, %arg1 : i32, i32
  }
}

</mosaic_0001>

<llo_original>
// kernel: _projection_2d.1
$region0: #{_projection_2d.1}
  #allocation0 [shape = 'u32[]', space=smem, size = 0x4, offset = 0x4, fixed_abs, tag = 'smem constant byte address 0x4 - core index']
  #allocation1 [shape = 'u32[144,128]{1,0:T(1,128)}', space=vmem, size = 0x12000, scoped, tag = 'internal scratch']
  #allocation2 [shape = 'f32[16,256]{1,0:T(8,128)}', space=vmem, size = 0x4000, scoped, tag = 'scratch operand']
  %s0 = inlined_call_operand.hbm [shape: f32[16,128], index: 0, kind: input, shape index: {}]
  %s1 = inlined_call_operand.hbm [shape: f32[128,256], index: 1, kind: input, shape index: {}]
  %s2 = inlined_call_operand.vmem [shape: f32[1,256], index: 2, kind: input, shape index: {}]
  %s3 = inlined_call_operand.hbm [shape: f32[16,256], index: 3, kind: output, shape index: {}]
  %s4 = sld [smem:[#allocation0]]
  $region38: #{_projection_2d.1} parent=0
    _
  %s6 = ssub.s32 1, %s4
  %s7 = scalar_select 0, %s6, %s4
  $region1: #{_projection_2d.1} parent=0
    #allocation3 [shape = 'u8[8192]{0}', space=vmem, size = 0x2000, scoped, tag = 'input window, operand 0, single buffered']
    #allocation4 [shape = 's32[1]{0}', space=sflag, size = 0x4, scoped, tag = 'scoped memory for _projection_2d.1']
    #allocation5 [shape = 's32[1]{0}', space=sflag, size = 0x4, scoped, tag = 'scoped memory for _projection_2d.1']
    #allocation6 [shape = 'u8[131072]{0}', space=vmem, size = 0x20000, scoped, tag = 'input window, operand 1, single buffered']
    #allocation7 [shape = 's32[1]{0}', space=sflag, size = 0x4, scoped, tag = 'scoped memory for _projection_2d.1']
    #allocation8 [shape = 'u8[16384]{0}', space=vmem, size = 0x4000, scoped, tag = 'output window, operand 0, single buffered']
    %8 = vsyncpa [#allocation4], 0
    %9 = vsyncpa [#allocation7], 0
    %10 = vsyncpa [#allocation5], 0
    // Predicated region
    $region2: #{_projection_2d.1} parent=1 // pred_check
      _
    $region3: #{_projection_2d.1} parent=1 // pred_check_branch
      %12 = sbr.rel (0) target = $region5
    $region4: #{_projection_2d.1} parent=1 // pred_region
      %s14 = ssub.s32 256, 256
      %15 = vsyncadd [#allocation4], %s14
      %s16 = sshll.u32 [#allocation3], 4
      %s17 = int_to_ptr.vmem [resolvable:$true] %s16
      %22 = dma.hbm_to_vmem [thread:$0]  %s0, 256, %s17, [#allocation4], 128, 128, 8
    $region5: #{_projection_2d.1} parent=1 // pred_fallthru
      _
    // Predicated region
    $region6: #{_projection_2d.1} parent=1 // pred_check
      _
    $region7: #{_projection_2d.1} parent=1 // pred_check_branch
      %24 = sbr.rel (0) target = $region9
    $region8: #{_projection_2d.1} parent=1 // pred_region
      %s26 = ssub.s32 4096, 4096
      %27 = vsyncadd [#allocation7], %s26
      %s28 = sshll.u32 [#allocation6], 4
      %s29 = int_to_ptr.vmem [resolvable:$true] %s28
      %34 = dma.hbm_to_vmem [thread:$0]  %s1, 4096, %s29, [#allocation7], 256, 256, 16
    $region9: #{_projection_2d.1} parent=1 // pred_fallthru
      _
    // Predicated region
    $region10: #{_projection_2d.1} parent=1 // pred_check
      _
    $region11: #{_projection_2d.1} parent=1 // pred_check_branch
      %36 = sbr.rel (0) target = $region13
    $region12: #{_projection_2d.1} parent=1 // pred_region
      _
    $region13: #{_projection_2d.1} parent=1 // pred_fallthru
      _
    // Predicated region
    $region14: #{_projection_2d.1} parent=1 // pred_check
      _
    $region15: #{_projection_2d.1} parent=1 // pred_check_branch
      %38 = sbr.rel (0) target = $region17
    $region16: #{_projection_2d.1} parent=1 // pred_region
      %39 = dma.done [#allocation4], 256
    $region17: #{_projection_2d.1} parent=1 // pred_fallthru
      _
    // Predicated region
    $region18: #{_projection_2d.1} parent=1 // pred_check
      _
    $region19: #{_projection_2d.1} parent=1 // pred_check_branch
      %41 = sbr.rel (0) target = $region21
    $region20: #{_projection_2d.1} parent=1 // pred_region
      %42 = dma.done [#allocation7], 4096
    $region21: #{_projection_2d.1} parent=1 // pred_fallthru
      _
    %p43 = scmp.eq.s32.totalorder 0, 0
    // Predicated region
    $region22: #{_projection_2d.1} parent=1 // pred_check
      %p44 = pneg %p43
    $region23: #{_projection_2d.1} parent=1 // pred_check_branch
      %46 = sbr.rel (%p44) target = $region25
    $region24: #{_projection_2d.1} parent=1 // pred_region
      %47 = vst [vmem:[#allocation2] sm:$0xff] 0.0
      %48 = vst [vmem:[#allocation2 + $0x8] sm:$0xff] 0.0
      %49 = vst [vmem:[#allocation2 + $0x10] sm:$0xff] 0.0
      %50 = vst [vmem:[#allocation2 + $0x18] sm:$0xff] 0.0
    $region25: #{_projection_2d.1} parent=1 // pred_fallthru
      _
    %v51 = vld [vmem:[#allocation2] sm:$0xff]
    %v52 = vld [vmem:[#allocation2 + $0x8] sm:$0xff]
    %v53 = vld [vmem:[#allocation2 + $0x10] sm:$0xff]
    %v54 = vld [vmem:[#allocation2 + $0x18] sm:$0xff]
    %v55 = vld [vmem:[#allocation3] sm:$0xff]
    %v56 = vld [vmem:[#allocation3 + $0x8] sm:$0xff]
    %v57 = vld [vmem:[#allocation6] sm:$0xff]
    %v58 = vld [vmem:[#allocation6 + $0x8] sm:$0xff]
    %v59 = vld [vmem:[#allocation6 + $0x10] sm:$0xff]
    %v60 = vld [vmem:[#allocation6 + $0x18] sm:$0xff]
    %v61 = vld [vmem:[#allocation6 + $0x20] sm:$0xff]
    %v62 = vld [vmem:[#allocation6 + $0x28] sm:$0xff]
    %v63 = vld [vmem:[#allocation6 + $0x30] sm:$0xff]
    %v64 = vld [vmem:[#allocation6 + $0x38] sm:$0xff]
    %v65 = vld [vmem:[#allocation6 + $0x40] sm:$0xff]
    %v66 = vld [vmem:[#allocation6 + $0x48] sm:$0xff]
    %v67 = vld [vmem:[#allocation6 + $0x50] sm:$0xff]
    %v68 = vld [vmem:[#allocation6 + $0x58] sm:$0xff]
    %v69 = vld [vmem:[#allocation6 + $0x60] sm:$0xff]
    %v70 = vld [vmem:[#allocation6 + $0x68] sm:$0xff]
    %v71 = vld [vmem:[#allocation6 + $0x70] sm:$0xff]
    %v72 = vld [vmem:[#allocation6 + $0x78] sm:$0xff]
    %v73 = vld [vmem:[#allocation6 + $0x80] sm:$0xff]
    %v74 = vld [vmem:[#allocation6 + $0x88] sm:$0xff]
    %v75 = vld [vmem:[#allocation6 + $0x90] sm:$0xff]
    %v76 = vld [vmem:[#allocation6 + $0x98] sm:$0xff]
    %v77 = vld [vmem:[#allocation6 + $0xa0] sm:$0xff]
    %v78 = vld [vmem:[#allocation6 + $0xa8] sm:$0xff]
    %v79 = vld [vmem:[#allocation6 + $0xb0] sm:$0xff]
    %v80 = vld [vmem:[#allocation6 + $0xb8] sm:$0xff]
    %v81 = vld [vmem:[#allocation6 + $0xc0] sm:$0xff]
    %v82 = vld [vmem:[#allocation6 + $0xc8] sm:$0xff]
    %v83 = vld [vmem:[#allocation6 + $0xd0] sm:$0xff]
    %v84 = vld [vmem:[#allocation6 + $0xd8] sm:$0xff]
    %v85 = vld [vmem:[#allocation6 + $0xe0] sm:$0xff]
    %v86 = vld [vmem:[#allocation6 + $0xe8] sm:$0xff]
    %v87 = vld [vmem:[#allocation6 + $0xf0] sm:$0xff]
    %v88 = vld [vmem:[#allocation6 + $0xf8] sm:$0xff]
    %89 = vmatprep.subr.mxu0 %v88
    %90 = vmatpush1.msra.mxu0 %v87
    %91 = vmatprep.subr.mxu0 %v86
    %92 = vmatpush1.msra.mxu0 %v85
    %93 = vmatprep.subr.mxu0 %v84
    %94 = vmatpush1.msra.mxu0 %v83
    %95 = vmatprep.subr.mxu0 %v82
    %96 = vmatpush1.msra.mxu0 %v81
    %97 = vmatprep.subr.mxu0 %v80
    %98 = vmatpush1.msra.mxu0 %v79
    %99 = vmatprep.subr.mxu0 %v78
    %100 = vmatpush1.msra.mxu0 %v77
    %101 = vmatprep.subr.mxu0 %v76
    %102 = vmatpush1.msra.mxu0 %v75
    %103 = vmatprep.subr.mxu0 %v74
    %104 = vmatpush1.msra.mxu0 %v73
    %105 = vmatprep.subr.mxu0 %v72
    %106 = vmatpush1.msra.mxu0 %v71
    %107 = vmatprep.subr.mxu0 %v70
    %108 = vmatpush1.msra.mxu0 %v69
    %109 = vmatprep.subr.mxu0 %v68
    %110 = vmatpush1.msra.mxu0 %v67
    %111 = vmatprep.subr.mxu0 %v66
    %112 = vmatpush1.msra.mxu0 %v65
    %113 = vmatprep.subr.mxu0 %v64
    %114 = vmatpush1.msra.mxu0 %v63
    %115 = vmatprep.subr.mxu0 %v62
    %116 = vmatpush1.msra.mxu0 %v61
    %117 = vmatprep.subr.mxu0 %v60
    %118 = vmatpush1.msra.mxu0 %v59
    %119 = vmatprep.subr.mxu0 %v58
    %120 = vmatpush1.msra.mxu0 %v57
    %121 = vmatprep.subr.mxu0 0.0
    %122 = vmatpush2.msra.mxu0 0.0
    %123 = vmatprep.subr.mxu0 0.0
    %124 = vmatpush2.msra.mxu0 0.0
    %125 = vmatprep.subr.mxu0 0.0
    %126 = vmatpush2.msra.mxu0 0.0
    %127 = vmatprep.subr.mxu0 0.0
    %128 = vmatpush2.msra.mxu0 0.0
    %129 = vmatprep.subr.mxu0 0.0
    %130 = vmatpush2.msra.mxu0 0.0
    %131 = vmatprep.subr.mxu0 0.0
    %132 = vmatpush2.msra.mxu0 0.0
    %133 = vmatprep.subr.mxu0 0.0
    %134 = vmatpush2.msra.mxu0 0.0
    %135 = vmatprep.subr.mxu0 0.0
    %136 = vmatpush2.msra.mxu0 0.0
    %137 = vmatprep.subr.mxu0 0.0
    %138 = vmatpush2.msra.mxu0 0.0
    %139 = vmatprep.subr.mxu0 0.0
    %140 = vmatpush2.msra.mxu0 0.0
    %141 = vmatprep.subr.mxu0 0.0
    %142 = vmatpush2.msra.mxu0 0.0
    %143 = vmatprep.subr.mxu0 0.0
    %144 = vmatpush2.msra.mxu0 0.0
    %145 = vmatprep.subr.mxu0 0.0
    %146 = vmatpush2.msra.mxu0 0.0
    %147 = vmatprep.subr.mxu0 0.0
    %148 = vmatpush2.msra.mxu0 0.0
    %149 = vmatprep.subr.mxu0 0.0
    %150 = vmatpush2.msra.mxu0 0.0
    %151 = vmatprep.subr.mxu0 0.0
    %152 = vmatpush2.msra.mxu0 0.0
    %153 = vmatprep.mubr.f32.mxu0 0.0
    %154 = vmatmul.mubr.f32.gmra.mxu0 %v55
    %v155 = vpop.f32.mrf.mxu0
    %v156 = vadd.f32 0.0, %v155
    %v157 = vpop.f32.mrf.mxu0
    %v158 = vadd.f32 0.0, %v157
    %159 = vmatprep.mubr.f32.mxu0 0.0
    %160 = vmatmul.mubr.f32.gmra.mxu0 %v56
    %v161 = vpop.f32.mrf.mxu0
    %v162 = vadd.f32 0.0, %v161
    %v163 = vpop.f32.mrf.mxu0
    %v164 = vadd.f32 0.0, %v163
    %165 = vdwg.mxu0
    %v166 = vadd.f32 %v51, %v156
    %v167 = vadd.f32 %v52, %v158
    %v168 = vadd.f32 %v53, %v162
    %v169 = vadd.f32 %v54, %v164
    %170 = vst [vmem:[#allocation2] sm:$0xff] %v166
    %171 = vst [vmem:[#allocation2 + $0x8] sm:$0xff] %v167
    %172 = vst [vmem:[#allocation2 + $0x10] sm:$0xff] %v168
    %173 = vst [vmem:[#allocation2 + $0x18] sm:$0xff] %v169
    // Predicated region
    $region26: #{_projection_2d.1} parent=1 // pred_check
      %p174 = pneg %p43
    $region27: #{_projection_2d.1} parent=1 // pred_check_branch
      %176 = sbr.rel (%p174) target = $region29
    $region28: #{_projection_2d.1} parent=1 // pred_region
      %v177 = vld [vmem:[#allocation2] sm:$0xff]
      %v178 = vld [vmem:[#allocation2 + $0x8] sm:$0xff]
      %v179 = vld [vmem:[#allocation2 + $0x10] sm:$0xff]
      %v180 = vld [vmem:[#allocation2 + $0x18] sm:$0xff]
      %v181 = vld [vmem:[%s2] sm:$0x3]
      %v183 = vlaneseq
      %v184 = vshrl.u32 %v183, 7
      %v185 = vsub.s32 0, %v184
      %v186 = vrot.slane %v181, %v185
      %v187 = vlaneseq
      %v188 = vshrl.u32 %v187, 7
      %v189 = vsub.s32 1, %v188
      %v190 = vrot.slane %v181, %v189
      %v193 = vadd.f32 %v177, %v186
      %v194 = vadd.f32 %v178, %v190
      %v195 = vadd.f32 %v179, %v186
      %v196 = vadd.f32 %v180, %v190
      %197 = vst [vmem:[#allocation8] sm:$0xff] %v193
      %198 = vst [vmem:[#allocation8 + $0x8] sm:$0xff] %v194
      %199 = vst [vmem:[#allocation8 + $0x10] sm:$0xff] %v195
      %200 = vst [vmem:[#allocation8 + $0x18] sm:$0xff] %v196
    $region29: #{_projection_2d.1} parent=1 // pred_fallthru
      _
    // Predicated region
    $region30: #{_projection_2d.1} parent=1 // pred_check
      _
    $region31: #{_projection_2d.1} parent=1 // pred_check_branch
      %202 = sbr.rel (0) target = $region33
    $region32: #{_projection_2d.1} parent=1 // pred_region
      %s204 = ssub.s32 512, 512
      %205 = vsyncadd [#allocation5], %s204
      %s206 = sshll.u32 [#allocation8], 4
      %s207 = int_to_ptr.vmem [resolvable:$true] %s206
      %212 = dma.vmem_to_hbm [thread:$0]  %s207, 512, %s3, [#allocation5], 256, 256, 16
    $region33: #{_projection_2d.1} parent=1 // pred_fallthru
      _
    // Predicated region
    $region34: #{_projection_2d.1} parent=1 // pred_check
      _
    $region35: #{_projection_2d.1} parent=1 // pred_check_branch
      %214 = sbr.rel (0) target = $region37
    $region36: #{_projection_2d.1} parent=1 // pred_region
      %215 = dma.done [#allocation5], 512
    $region37: #{_projection_2d.1} parent=1 // pred_fallthru
      _
    %216 = vsyncpa [#allocation4], 1
    %217 = vsyncpa [#allocation7], 1
    %218 = vsyncpa [#allocation5], 1

</llo_original>
